<compile_context>
chip_gen: v7x
topology: tpu7x:2x2x1
jax: 0.10.0
libtpu: 0.0.40
codegen_flags: <defaults>
</compile_context>

<pallas_src>
import functools
import math

import jax
import jax.numpy as jnp
from jax.experimental import pallas as pl
from jax.experimental.pallas import tpu as pltpu


def _fit_tile(dim, preferred):
    """Largest clean tile: full dim if small or ragged, else the preferred size."""
    if dim <= preferred or dim % preferred != 0:
        # TODO(synk): pad ragged dims instead of falling back to a single block.
        return dim
    return preferred


# ----------------------- kernel 1: cosine logits (MXU matmul) -------------------

def _logits_kernel(inv_xn_ref, inv_wn_ref, x_ref, w_ref, out_ref, acc_ref):
    @pl.when(pl.program_id(2) == 0)
    def _():
        acc_ref[...] = jnp.zeros_like(acc_ref)

    acc_ref[...] += jnp.dot(x_ref[...], w_ref[...],
                            preferred_element_type=jnp.float32)

    @pl.when(pl.program_id(2) == pl.num_programs(2) - 1)
    def _():
        # hoisted normalization applied as an outer scale on the output tile
        out_ref[...] = (acc_ref[...] * inv_xn_ref[...] * inv_wn_ref[...]
                        ).astype(out_ref.dtype)


def cosine_logits(x, W, inv_xn, inv_wn, *, tm=256, tn=512, tk=512):
    B, E = x.shape
    CS = W.shape[1]
    tm, tn, tk = _fit_tile(B, tm), _fit_tile(CS, tn), _fit_tile(E, tk)
    grid = (B // tm, CS // tn, E // tk)
    return pl.pallas_call(
        _logits_kernel,
        out_shape=jax.ShapeDtypeStruct((B, CS), jnp.float32),
        grid=grid,
        in_specs=[
            pl.BlockSpec((tm, 1), lambda i, j, k: (i, 0)),    # 1/||x_row||  (f32)
            pl.BlockSpec((1, tn), lambda i, j, k: (0, j)),    # 1/||W_col||  (f32)
            pl.BlockSpec((tm, tk), lambda i, j, k: (i, k)),   # x  (bf16)
            pl.BlockSpec((tk, tn), lambda i, j, k: (k, j)),   # W  (bf16)
        ],
        out_specs=pl.BlockSpec((tm, tn), lambda i, j, k: (i, j)),
        scratch_shapes=[pltpu.VMEM((tm, tn), jnp.float32)],
        compiler_params=pltpu.CompilerParams(
            dimension_semantics=("parallel", "parallel", "arbitrary")),
    )(inv_xn, inv_wn, x, W)


# -------------------- kernel 2: dynamic-s statistics (one pass) -----------------

def _scale_stats_kernel(s_ref, logits_ref, rowmax_ref, rowsumexp_ref):
    s = s_ref[0, 0]
    z = logits_ref[...] * s                                    # (tb, C*S)
    m = jnp.max(z, axis=1, keepdims=True)
    rowmax_ref[...] = m
    rowsumexp_ref[...] = jnp.sum(jnp.exp(z - m), axis=1, keepdims=True)


def scale_stats(logits, s, *, tb=256):
    B, CS = logits.shape
    tb = _fit_tile(B, tb)
    s_arr = jnp.reshape(s.astype(jnp.float32), (1, 1))
    # (B, 1) side outputs are tiny (masked stores are negligible vs the logits read).
    return pl.pallas_call(
        _scale_stats_kernel,
        out_shape=(jax.ShapeDtypeStruct((B, 1), jnp.float32),
                   jax.ShapeDtypeStruct((B, 1), jnp.float32)),
        grid=(B // tb,),
        in_specs=[
            pl.BlockSpec((1, 1), lambda i: (0, 0),
                         memory_space=pltpu.MemorySpace.SMEM),
            pl.BlockSpec((tb, CS), lambda i: (i, 0)),
        ],
        out_specs=(pl.BlockSpec((tb, 1), lambda i: (i, 0)),
                   pl.BlockSpec((tb, 1), lambda i: (i, 0))),
        compiler_params=pltpu.CompilerParams(dimension_semantics=("parallel",)),
    )(s_arr, logits)


# ------------------------ kernel 3: soft-label CE loss --------------------------

def _loss_kernel(s_ref, logits_ref, t_ref, loss_ref, *, n_classes, n_subclusters):
    s = s_ref[0, 0]
    z = logits_ref[...] * s                                    # (tb, C*S)
    m = jnp.max(z, axis=1, keepdims=True)
    e = jnp.exp(z - m)
    prob = e * pl.reciprocal(jnp.sum(e, axis=1, keepdims=True), approx=True)

    # prob.view(B, C, S).sum(2) as prob @ G with G built in-kernel from iota
    # (no dense (C*S, C) grouping matrix is DMA'd from HBM).
    # TODO(synk): for very large C, switch to a lane-grouped reshape / strided sum
    # to avoid the O(S*C^2) in-kernel G (kept as a matmul here for robust lowering).
    cs = n_classes * n_subclusters
    k_idx = jax.lax.broadcasted_iota(jnp.int32, (cs, n_classes), 0)
    c_idx = jax.lax.broadcasted_iota(jnp.int32, (cs, n_classes), 1)
    lo = c_idx * n_subclusters
    grp = jnp.logical_and(k_idx >= lo, k_idx < lo + n_subclusters)
    prob_c = jnp.dot(prob, grp.astype(jnp.float32),
                     preferred_element_type=jnp.float32)       # (tb, C)

    logp = jnp.log(prob_c)
    # CrossEntropyLoss applies log_softmax to log(prob); since exp(log p) == p,
    # logsumexp(log p) == log(sum_c p):  ll = log p - log(sum_c p).
    ll = logp - jnp.log(jnp.sum(prob_c, axis=1, keepdims=True))
    loss_ref[...] = -jnp.sum(t_ref[...] * ll, axis=1, keepdims=True)


def per_sample_loss(logits, t, s, *, n_classes, n_subclusters, tb=256):
    B, CS = logits.shape
    C = t.shape[1]
    tb = _fit_tile(B, tb)
    s_arr = jnp.reshape(s.astype(jnp.float32), (1, 1))
    kernel = functools.partial(_loss_kernel, n_classes=n_classes,
                               n_subclusters=n_subclusters)
    return pl.pallas_call(
        kernel,
        out_shape=jax.ShapeDtypeStruct((B, 1), jnp.float32),
        grid=(B // tb,),
        in_specs=[
            pl.BlockSpec((1, 1), lambda i: (0, 0),
                         memory_space=pltpu.MemorySpace.SMEM),
            pl.BlockSpec((tb, CS), lambda i: (i, 0)),
            pl.BlockSpec((tb, C), lambda i: (i, 0)),
        ],
        out_specs=pl.BlockSpec((tb, 1), lambda i: (i, 0)),
        compiler_params=pltpu.CompilerParams(dimension_semantics=("parallel",)),
    )(s_arr, logits, t)


# ----------------------------------- forward ------------------------------------

def scadacos_forward(x, t, W, s, *, n_classes, n_subclusters, eps=1e-7,
                     training=True, dynamic=True, compute_dtype=jnp.bfloat16,
                     tm=256, tn=512, tk=512, tb=256):
    """Mirrors SCAdaCos.forward; returns (loss, updated_s)."""
    B, E = x.shape
    CS = W.shape[1]
    assert CS == n_classes * n_subclusters

    # Hoisted inverse L2 norms (rsqrt on the EUP path; == 1 / max(||.||, 1e-12)).
    inv_xn = jax.lax.rsqrt(jnp.maximum(jnp.sum(x * x, axis=1, keepdims=True), 1e-24))
    inv_wn = jax.lax.rsqrt(jnp.maximum(jnp.sum(W * W, axis=0, keepdims=True), 1e-24))

    logits = cosine_logits(x.astype(compute_dtype), W.astype(compute_dtype),
                           inv_xn, inv_wn, tm=tm, tn=tn, tk=tk)   # (B, C*S) f32

    s = jnp.asarray(s, jnp.float32)
    if training and dynamic:
        rowmax, rowsumexp = scale_stats(logits, s, tb=tb)          # (B,1), (B,1)
        max_s = jnp.max(rowmax)
        B_avg = jnp.mean(rowsumexp * jnp.exp(rowmax - max_s))
        # TODO(synk): arccos stays in plain JAX (inverse-trig lowering on the Mosaic
        # path is not guaranteed); XLA fuses clip+acos+reshape+reduce into one pass.
        theta = jnp.arccos(jnp.clip(logits, -1.0 + eps, 1.0 - eps))
        # t.repeat(1, S) layout: class c <- columns {c, c+C, ..., c+(S-1)*C}
        # (kept faithful to the original module, which uses a different layout here
        #  than in the loss grouping).
        theta_class = jnp.sum(
            t * theta.reshape(B, n_subclusters, n_classes).sum(axis=1), axis=1)
        # torch.median returns the lower middle value for even counts.
        theta_med = jnp.sort(theta_class)[(B - 1) // 2]
        s = (max_s + jnp.log(B_avg)) / (jnp.cos(jnp.minimum(jnp.pi / 4.0, theta_med))
                                        + eps)

    per_sample = per_sample_loss(logits, t, s, n_classes=n_classes,
                                 n_subclusters=n_subclusters, tb=tb)
    return jnp.mean(per_sample), s   # reduction='mean'


# -------------------------- pure-JAX reference (check) ---------------------------

def reference_forward(x, t, W, s, n_classes, n_subclusters, eps=1e-7,
                      training=True, dynamic=True, compute_dtype=jnp.float32):
    """Naive reference.  compute_dtype=bf16 mirrors the kernel's 'raw bf16 matmul +
    f32 inverse-norm post-scale'; compute_dtype=f32 mirrors the PyTorch module."""
    B = x.shape[0]
    if compute_dtype == jnp.float32:
        xn = x / jnp.maximum(jnp.linalg.norm(x, axis=1, keepdims=True), 1e-12)
        Wn = W / jnp.maximum(jnp.linalg.norm(W, axis=0, keepdims=True), 1e-12)
        logits = jnp.dot(xn, Wn, precision=jax.lax.Precision.HIGHEST)
    else:
        inv_xn = jax.lax.rsqrt(jnp.maximum(jnp.sum(x * x, 1, keepdims=True), 1e-24))
        inv_wn = jax.lax.rsqrt(jnp.maximum(jnp.sum(W * W, 0, keepdims=True), 1e-24))
        logits = jnp.dot(x.astype(compute_dtype), W.astype(compute_dtype),
                         preferred_element_type=jnp.float32) * inv_xn * inv_wn
    theta = jnp.arccos(jnp.clip(logits, -1.0 + eps, 1.0 - eps))
    s = jnp.asarray(s, jnp.float32)
    if training and dynamic:
        s_logits = s * logits
        max_s = jnp.max(s_logits)
        B_avg = jnp.mean(jnp.sum(jnp.exp(s_logits - max_s), axis=1))
        theta_class = jnp.sum(jnp.tile(t, (1, n_subclusters)) * theta, axis=1)
        theta_med = jnp.sort(theta_class)[(B - 1) // 2]
        s = (max_s + jnp.log(B_avg)) / (jnp.cos(jnp.minimum(jnp.pi / 4.0, theta_med))
                                        + eps)
    z = logits * s
    prob = jax.nn.softmax(z, axis=1)
    prob_c = prob.reshape(B, n_classes, n_subclusters).sum(axis=2)
    ll = jax.nn.log_softmax(jnp.log(prob_c), axis=1)
    return jnp.mean(-jnp.sum(t * ll, axis=1)), s


# ------------------------------------- main --------------------------------------

if __name__ == "__main__":
    # small deterministic example; C*S chosen as a multiple of 128 (lane-dense).
    batch, embed_size, n_classes, n_subclusters = 8, 64, 16, 8
    CS = n_classes * n_subclusters                                 # 128

    key = jax.random.PRNGKey(0)
    kx, kl, kw = jax.random.split(key, 3)
    x = jax.random.normal(kx, (batch, embed_size), dtype=jnp.float32)
    labels = jax.random.randint(kl, (batch,), 0, n_classes)
    t = jax.nn.one_hot(labels, n_classes, dtype=jnp.float32)

    # nn.init.xavier_uniform_ for W of shape (embed_size, n_classes * n_subclusters)
    limit = math.sqrt(6.0 / (embed_size + CS))
    W = jax.random.uniform(kw, (embed_size, CS), dtype=jnp.float32,
                           minval=-limit, maxval=limit)
    s_init = jnp.float32(math.sqrt(2.0) * math.log(CS - 1))

    fwd = jax.jit(scadacos_forward,
                  static_argnames=("n_classes", "n_subclusters", "training",
                                   "dynamic", "compute_dtype",
                                   "tm", "tn", "tk", "tb"))

    loss, s_new = fwd(x, t, W, s_init,
                      n_classes=n_classes, n_subclusters=n_subclusters)
    loss, s_new = jax.block_until_ready((loss, s_new))

    # Tight check against a plain-JAX reference that mirrors the bf16 matmul +
    # post-scale but implements the grouping / stats / CE independently.
    loss_m, s_m = reference_forward(x, t, W, s_init, n_classes, n_subclusters,
                                    compute_dtype=jnp.bfloat16)
    assert abs(float(loss) - float(loss_m)) < 1e-3, (float(loss), float(loss_m))
    assert abs(float(s_new) - float(s_m)) < 1e-3, (float(s_new), float(s_m))

    # Loose sanity check against the fully f32 PyTorch-faithful reference
    # (bf16 only perturbs the dynamically computed scale s).
    loss_f, _ = reference_forward(x, t, W, s_init, n_classes, n_subclusters,
                                  compute_dtype=jnp.float32)
    assert bool(jnp.isfinite(loss))
    assert abs(float(loss) - float(loss_f)) < 0.25, (float(loss), float(loss_f))

    print("KERNEL_OK")
</pallas_src>

<mosaic_0001>
module attributes {stable_mosaic.version = 11 : i64} {
  func.func @_scale_stats_kernel(%arg0: i32, %arg1: memref<1x1xf32, #tpu.memory_space<smem>>, %arg2: memref<8x128xf32, #tpu.memory_space<vmem>>, %arg3: memref<8x1xf32, #tpu.memory_space<vmem>>, %arg4: memref<8x1xf32, #tpu.memory_space<vmem>>) attributes {dimension_semantics = [#tpu.dimension_semantics<parallel>], iteration_bounds = array<i64: 1>, scalar_prefetch = 0 : i64, scratch_operands = 0 : i64, tpu.core_type = #tpu.core_type<tc>, window_params = [{transform_indices = @transform_0, window_bounds = array<i64: 1, 1>}, {transform_indices = @transform_1, window_bounds = array<i64: 8, 128>}, {transform_indices = @transform_2, window_bounds = array<i64: 8, 1>}, {transform_indices = @transform_3, window_bounds = array<i64: 8, 1>}]} {
    %c0 = arith.constant 0 : index
    %c0_0 = arith.constant 0 : index
    %0 = memref.load %arg1[%c0, %c0_0] : memref<1x1xf32, #tpu.memory_space<smem>>
    %c0_1 = arith.constant 0 : index
    %c0_2 = arith.constant 0 : index
    %1 = vector.load %arg2[%c0_1, %c0_2] : memref<8x128xf32, #tpu.memory_space<vmem>>, vector<8x128xf32>
    %2 = vector.broadcast %0 : f32 to vector<8x128xf32>
    %3 = arith.mulf %1, %2 : vector<8x128xf32>
    %cst = arith.constant dense<0xFF800000> : vector<8xf32>
    %4 = vector.multi_reduction <maximumf>, %3, %cst [1] : vector<8x128xf32> to vector<8xf32>
    %5 = vector.shape_cast %4 : vector<8xf32> to vector<8x1xf32>
    %c0_3 = arith.constant 0 : index
    %c0_4 = arith.constant 0 : index
    %6 = vector.load %arg3[%c0_3, %c0_4] : memref<8x1xf32, #tpu.memory_space<vmem>>, vector<8x1xf32>
    tpu.vector_store %arg3[%c0_3, %c0_4], %5 {strides = array<i32>} : memref<8x1xf32, #tpu.memory_space<vmem>>, vector<8x1xf32>,
    %7 = vector.broadcast %5 : vector<8x1xf32> to vector<8x128xf32>
    %8 = arith.subf %3, %7 : vector<8x128xf32>
    %9 = math.exp %8 : vector<8x128xf32>
    %cst_5 = arith.constant dense<0.000000e+00> : vector<8xf32>
    %10 = vector.multi_reduction <add>, %9, %cst_5 [1] : vector<8x128xf32> to vector<8xf32>
    %11 = vector.shape_cast %10 : vector<8xf32> to vector<8x1xf32>
    %c0_6 = arith.constant 0 : index
    %c0_7 = arith.constant 0 : index
    %12 = vector.load %arg4[%c0_6, %c0_7] : memref<8x1xf32, #tpu.memory_space<vmem>>, vector<8x1xf32>
    tpu.vector_store %arg4[%c0_6, %c0_7], %11 {strides = array<i32>} : memref<8x1xf32, #tpu.memory_space<vmem>>, vector<8x1xf32>,
    return
  }
  func.func @transform_0(%arg0: i32) -> (i32, i32) {
    %c0_i32 = arith.constant 0 : i32
    %c0_i32_0 = arith.constant 0 : i32
    %c0_i32_1 = arith.constant 0 : i32
    return %c0_i32, %c0_i32_0 : i32, i32
  }
  func.func @transform_1(%arg0: i32) -> (i32, i32) {
    %c0_i32 = arith.constant 0 : i32
    %c0_i32_0 = arith.constant 0 : i32
    return %arg0, %c0_i32 : i32, i32
  }
  func.func @transform_2(%arg0: i32) -> (i32, i32) {
    %c0_i32 = arith.constant 0 : i32
    %c0_i32_0 = arith.constant 0 : i32
    return %arg0, %c0_i32 : i32, i32
  }
  func.func @transform_3(%arg0: i32) -> (i32, i32) {
    %c0_i32 = arith.constant 0 : i32
    %c0_i32_0 = arith.constant 0 : i32
    return %arg0, %c0_i32 : i32, i32
  }
}

module attributes {stable_mosaic.version = 11 : i64} {
  func.func @_logits_kernel(%arg0: i32, %arg1: i32, %arg2: i32, %arg3: memref<8x1xf32, #tpu.memory_space<vmem>>, %arg4: memref<1x128xf32, #tpu.memory_space<vmem>>, %arg5: memref<8x64xbf16, #tpu.memory_space<vmem>>, %arg6: memref<64x128xbf16, #tpu.memory_space<vmem>>, %arg7: memref<8x128xf32, #tpu.memory_space<vmem>>, %arg8: memref<8x128xf32, #tpu.memory_space<vmem>>) attributes {dimension_semantics = [#tpu.dimension_semantics<parallel>, #tpu.dimension_semantics<parallel>, #tpu.dimension_semantics<arbitrary>], iteration_bounds = array<i64: 1, 1, 1>, scalar_prefetch = 0 : i64, scratch_operands = 1 : i64, tpu.core_type = #tpu.core_type<tc>, window_params = [{transform_indices = @transform_0, window_bounds = array<i64: 8, 1>}, {transform_indices = @transform_1, window_bounds = array<i64: 1, 128>}, {transform_indices = @transform_2, window_bounds = array<i64: 8, 64>}, {transform_indices = @transform_3, window_bounds = array<i64: 64, 128>}, {transform_indices = @transform_4, window_bounds = array<i64: 8, 128>}]} {
    %c0_i32 = arith.constant 0 : i32
    %0 = arith.cmpi eq, %arg2, %c0_i32 : i32
    %1 = arith.extui %0 : i1 to i32
    %c0_i32_0 = arith.constant 0 : i32
    %2 = arith.cmpi ne, %1, %c0_i32_0 : i32
    scf.if %2 {
      %cst_10 = arith.constant 0.000000e+00 : f32
      %12 = vector.broadcast %cst_10 : f32 to vector<8x128xf32>
      %c0_11 = arith.constant 0 : index
      %c0_12 = arith.constant 0 : index
      %13 = vector.load %arg8[%c0_11, %c0_12] : memref<8x128xf32, #tpu.memory_space<vmem>>, vector<8x128xf32>
      tpu.vector_store %arg8[%c0_11, %c0_12], %12 {strides = array<i32>} : memref<8x128xf32, #tpu.memory_space<vmem>>, vector<8x128xf32>,
    } else {
    }
    %c0 = arith.constant 0 : index
    %c0_1 = arith.constant 0 : index
    %3 = vector.load %arg8[%c0, %c0_1] : memref<8x128xf32, #tpu.memory_space<vmem>>, vector<8x128xf32>
    %c0_2 = arith.constant 0 : index
    %c0_3 = arith.constant 0 : index
    %4 = vector.load %arg5[%c0_2, %c0_3] : memref<8x64xbf16, #tpu.memory_space<vmem>>, vector<8x64xbf16>
    %c0_4 = arith.constant 0 : index
    %c0_5 = arith.constant 0 : index
    %5 = vector.load %arg6[%c0_4, %c0_5] : memref<64x128xbf16, #tpu.memory_space<vmem>>, vector<64x128xbf16>
    %cst = arith.constant dense<0.000000e+00> : vector<8x128xf32>
    %6 = tpu.matmul %4, %5, %cst {dimension_numbers = #tpu.dot_dimension_numbers<[1], [0], [0], [1], [0, 0, 1, 1], [], []>} : vector<8x64xbf16>, vector<64x128xbf16>, vector<8x128xf32> -> vector<8x128xf32>
    %7 = arith.addf %3, %6 : vector<8x128xf32>
    %c0_6 = arith.constant 0 : index
    %c0_7 = arith.constant 0 : index
    %8 = vector.load %arg8[%c0_6, %c0_7] : memref<8x128xf32, #tpu.memory_space<vmem>>, vector<8x128xf32>
    tpu.vector_store %arg8[%c0_6, %c0_7], %7 {strides = array<i32>} : memref<8x128xf32, #tpu.memory_space<vmem>>, vector<8x128xf32>,
    %c0_i32_8 = arith.constant 0 : i32
    %9 = arith.cmpi eq, %arg2, %c0_i32_8 : i32
    %10 = arith.extui %9 : i1 to i32
    %c0_i32_9 = arith.constant 0 : i32
    %11 = arith.cmpi ne, %10, %c0_i32_9 : i32
    scf.if %11 {
      %c0_10 = arith.constant 0 : index
      %c0_11 = arith.constant 0 : index
      %12 = vector.load %arg8[%c0_10, %c0_11] : memref<8x128xf32, #tpu.memory_space<vmem>>, vector<8x128xf32>
      %c0_12 = arith.constant 0 : index
      %c0_13 = arith.constant 0 : index
      %13 = vector.load %arg3[%c0_12, %c0_13] : memref<8x1xf32, #tpu.memory_space<vmem>>, vector<8x1xf32>
      %14 = vector.broadcast %13 : vector<8x1xf32> to vector<8x128xf32>
      %15 = arith.mulf %12, %14 : vector<8x128xf32>
      %c0_14 = arith.constant 0 : index
      %c0_15 = arith.constant 0 : index
      %16 = vector.load %arg4[%c0_14, %c0_15] : memref<1x128xf32, #tpu.memory_space<vmem>>, vector<1x128xf32>
      %17 = vector.broadcast %16 : vector<1x128xf32> to vector<8x128xf32>
      %18 = arith.mulf %15, %17 : vector<8x128xf32>
      %c0_16 = arith.constant 0 : index
      %c0_17 = arith.constant 0 : index
      %19 = vector.load %arg7[%c0_16, %c0_17] : memref<8x128xf32, #tpu.memory_space<vmem>>, vector<8x128xf32>
      tpu.vector_store %arg7[%c0_16, %c0_17], %18 {strides = array<i32>} : memref<8x128xf32, #tpu.memory_space<vmem>>, vector<8x128xf32>,
    } else {
    }
    return
  }
  func.func @transform_0(%arg0: i32, %arg1: i32, %arg2: i32) -> (i32, i32) {
    %c0_i32 = arith.constant 0 : i32
    %c0_i32_0 = arith.constant 0 : i32
    return %arg0, %c0_i32 : i32, i32
  }
  func.func @transform_1(%arg0: i32, %arg1: i32, %arg2: i32) -> (i32, i32) {
    %c0_i32 = arith.constant 0 : i32
    %c0_i32_0 = arith.constant 0 : i32
    return %c0_i32, %arg1 : i32, i32
  }
  func.func @transform_2(%arg0: i32, %arg1: i32, %arg2: i32) -> (i32, i32) {
    %c0_i32 = arith.constant 0 : i32
    return %arg0, %arg2 : i32, i32
  }
  func.func @transform_3(%arg0: i32, %arg1: i32, %arg2: i32) -> (i32, i32) {
    %c0_i32 = arith.constant 0 : i32
    return %arg2, %arg1 : i32, i32
  }
  func.func @transform_4(%arg0: i32, %arg1: i32, %arg2: i32) -> (i32, i32) {
    %c0_i32 = arith.constant 0 : i32
    return %arg0, %arg1 : i32, i32
  }
}

module attributes {stable_mosaic.version = 11 : i64} {
  func.func @_loss_kernel(%arg0: i32, %arg1: memref<1x1xf32, #tpu.memory_space<smem>>, %arg2: memref<8x128xf32, #tpu.memory_space<vmem>>, %arg3: memref<8x16xf32, #tpu.memory_space<vmem>>, %arg4: memref<8x1xf32, #tpu.memory_space<vmem>>) attributes {dimension_semantics = [#tpu.dimension_semantics<parallel>], iteration_bounds = array<i64: 1>, scalar_prefetch = 0 : i64, scratch_operands = 0 : i64, tpu.core_type = #tpu.core_type<tc>, window_params = [{transform_indices = @transform_0, window_bounds = array<i64: 1, 1>}, {transform_indices = @transform_1, window_bounds = array<i64: 8, 128>}, {transform_indices = @transform_2, window_bounds = array<i64: 8, 16>}, {transform_indices = @transform_3, window_bounds = array<i64: 8, 1>}]} {
    %c0 = arith.constant 0 : index
    %c0_0 = arith.constant 0 : index
    %0 = memref.load %arg1[%c0, %c0_0] : memref<1x1xf32, #tpu.memory_space<smem>>
    %c0_1 = arith.constant 0 : index
    %c0_2 = arith.constant 0 : index
    %1 = vector.load %arg2[%c0_1, %c0_2] : memref<8x128xf32, #tpu.memory_space<vmem>>, vector<8x128xf32>
    %2 = vector.broadcast %0 : f32 to vector<8x128xf32>
    %3 = arith.mulf %1, %2 : vector<8x128xf32>
    %cst = arith.constant dense<0xFF800000> : vector<8xf32>
    %4 = vector.multi_reduction <maximumf>, %3, %cst [1] : vector<8x128xf32> to vector<8xf32>
    %5 = vector.shape_cast %4 : vector<8xf32> to vector<8x1xf32>
    %6 = vector.broadcast %5 : vector<8x1xf32> to vector<8x128xf32>
    %7 = arith.subf %3, %6 : vector<8x128xf32>
    %8 = math.exp %7 : vector<8x128xf32>
    %cst_3 = arith.constant dense<0.000000e+00> : vector<8xf32>
    %9 = vector.multi_reduction <add>, %8, %cst_3 [1] : vector<8x128xf32> to vector<8xf32>
    %10 = vector.shape_cast %9 : vector<8xf32> to vector<8x1xf32>
    %11 = tpu.reciprocal %10 {approx = true} : vector<8x1xf32> -> vector<8x1xf32>
    %12 = vector.broadcast %11 : vector<8x1xf32> to vector<8x128xf32>
    %13 = arith.mulf %8, %12 : vector<8x128xf32>
    %14 = tpu.iota {dimensions = array<i32: 0>} : vector<128x16xi32>
    %15 = tpu.iota {dimensions = array<i32: 1>} : vector<128x16xi32>
    %c8_i32 = arith.constant 8 : i32
    %16 = vector.broadcast %c8_i32 : i32 to vector<128x16xi32>
    %17 = arith.muli %15, %16 : vector<128x16xi32>
    %18 = arith.cmpi sge, %14, %17 : vector<128x16xi32>
    %c8_i32_4 = arith.constant 8 : i32
    %19 = vector.broadcast %c8_i32_4 : i32 to vector<128x16xi32>
    %20 = arith.addi %17, %19 : vector<128x16xi32>
    %21 = arith.cmpi slt, %14, %20 : vector<128x16xi32>
    %22 = arith.andi %18, %21 : vector<128x16xi1>
    %23 = arith.extui %22 : vector<128x16xi1> to vector<128x16xi32>
    %24 = arith.sitofp %23 : vector<128x16xi32> to vector<128x16xf32>
    %cst_5 = arith.constant dense<0.000000e+00> : vector<8x16xf32>
    %25 = tpu.matmul %13, %24, %cst_5 {dimension_numbers = #tpu.dot_dimension_numbers<[1], [0], [0], [1], [0, 0, 1, 1], [], []>} : vector<8x128xf32>, vector<128x16xf32>, vector<8x16xf32> -> vector<8x16xf32>
    %26 = math.log %25 : vector<8x16xf32>
    %cst_6 = arith.constant dense<0.000000e+00> : vector<8xf32>
    %27 = vector.multi_reduction <add>, %25, %cst_6 [1] : vector<8x16xf32> to vector<8xf32>
    %28 = vector.shape_cast %27 : vector<8xf32> to vector<8x1xf32>
    %29 = math.log %28 : vector<8x1xf32>
    %30 = vector.broadcast %29 : vector<8x1xf32> to vector<8x16xf32>
    %31 = arith.subf %26, %30 : vector<8x16xf32>
    %c0_7 = arith.constant 0 : index
    %c0_8 = arith.constant 0 : index
    %32 = vector.load %arg3[%c0_7, %c0_8] : memref<8x16xf32, #tpu.memory_space<vmem>>, vector<8x16xf32>
    %33 = arith.mulf %32, %31 : vector<8x16xf32>
    %cst_9 = arith.constant dense<0.000000e+00> : vector<8xf32>
    %34 = vector.multi_reduction <add>, %33, %cst_9 [1] : vector<8x16xf32> to vector<8xf32>
    %35 = vector.shape_cast %34 : vector<8xf32> to vector<8x1xf32>
    %cst_10 = arith.constant 0.000000e+00 : f32
    %36 = vector.broadcast %cst_10 : f32 to vector<8x1xf32>
    %37 = arith.subf %36, %35 : vector<8x1xf32>
    %c0_11 = arith.constant 0 : index
    %c0_12 = arith.constant 0 : index
    %38 = vector.load %arg4[%c0_11, %c0_12] : memref<8x1xf32, #tpu.memory_space<vmem>>, vector<8x1xf32>
    tpu.vector_store %arg4[%c0_11, %c0_12], %37 {strides = array<i32>} : memref<8x1xf32, #tpu.memory_space<vmem>>, vector<8x1xf32>,
    return
  }
  func.func @transform_0(%arg0: i32) -> (i32, i32) {
    %c0_i32 = arith.constant 0 : i32
    %c0_i32_0 = arith.constant 0 : i32
    %c0_i32_1 = arith.constant 0 : i32
    return %c0_i32, %c0_i32_0 : i32, i32
  }
  func.func @transform_1(%arg0: i32) -> (i32, i32) {
    %c0_i32 = arith.constant 0 : i32
    %c0_i32_0 = arith.constant 0 : i32
    return %arg0, %c0_i32 : i32, i32
  }
  func.func @transform_2(%arg0: i32) -> (i32, i32) {
    %c0_i32 = arith.constant 0 : i32
    %c0_i32_0 = arith.constant 0 : i32
    return %arg0, %c0_i32 : i32, i32
  }
  func.func @transform_3(%arg0: i32) -> (i32, i32) {
    %c0_i32 = arith.constant 0 : i32
    %c0_i32_0 = arith.constant 0 : i32
    return %arg0, %c0_i32 : i32, i32
  }
}

</mosaic_0001>

<llo_original>
// kernel: scadacos_forward.4
$region0: #{scadacos_forward.4}
  #allocation0 [shape = 'u32[]', space=smem, size = 0x4, offset = 0x4, fixed_abs, tag = 'smem constant byte address 0x4 - core index']
  #allocation1 [shape = 'u32[144,128]{1,0:T(1,128)}', space=vmem, size = 0x12000, scoped, tag = 'internal scratch']
  #allocation2 [shape = 'f32[1,1]{1,0:T(1,128)S(6)}', space=smem, size = 0x200, scoped, tag = 'scoped memory for scadacos_forward.4']
  %s0 = inlined_call_operand.<no memory space> [shape: f32[1,1], index: 0, kind: input, shape index: {}]
  %s1 = inlined_call_operand.vmem [shape: f32[8,128], index: 1, kind: input, shape index: {}]
  %s2 = inlined_call_operand.vmem [shape: f32[8,1], index: 2, kind: output, shape index: {0}]
  %s3 = inlined_call_operand.vmem [shape: f32[8,1], index: 3, kind: output, shape index: {1}]
  %4 = xla_tuple %s2, %s3
  %s5 = sld [smem:[#allocation0]]
  $region26: #{scadacos_forward.4} parent=0
    _
  %s7 = ssub.s32 1, %s5
  %s8 = scalar_select 0, %s7, %s5
  %9 = sst [smem:[#allocation2]] %s0
  // Predicated region
  $region2: #{scadacos_forward.4} parent=0 // pred_check
    _
  $region3: #{scadacos_forward.4} parent=0 // pred_check_branch
    %11 = sbr.rel (0) target = $region5
  $region4: #{scadacos_forward.4} parent=0 // pred_region
    _
  $region5: #{scadacos_forward.4} parent=0 // pred_fallthru
    _
  // Predicated region
  $region6: #{scadacos_forward.4} parent=0 // pred_check
    _
  $region7: #{scadacos_forward.4} parent=0 // pred_check_branch
    %13 = sbr.rel (0) target = $region9
  $region8: #{scadacos_forward.4} parent=0 // pred_region
    _
  $region9: #{scadacos_forward.4} parent=0 // pred_fallthru
    _
  %s14 = sld [smem:[#allocation2]]
  %v15 = vld [vmem:[%s1] sm:$0xff]
  %v16 = vstv %s14
  %v17 = vmul.f32 %v15, %v16
  %18 = vmax.xlane.f32.xlu0 %v17
  %v19 = vpop.xlane.xlu0 %18
  %vm20 = vcmask 7168
  %21 = vst.msk [vmem:[%s2] sm:$0xff] %vm20, %v19
  %v22 = vsub.f32 %v17, %v19
  %v23 = vmul.f32 %v22, 1.442695
  %v24 = vpow.pop %v23
  %25 = vadd.xlane.f32.xlu0 %v24
  %v26 = vpop.xlane.xlu0 %25
  %27 = vst.msk [vmem:[%s3] sm:$0xff] %vm20, %v26
  // Predicated region
  $region10: #{scadacos_forward.4} parent=0 // pred_check
    _
  $region11: #{scadacos_forward.4} parent=0 // pred_check_branch
    %29 = sbr.rel (0) target = $region13
  $region12: #{scadacos_forward.4} parent=0 // pred_region
    _
  $region13: #{scadacos_forward.4} parent=0 // pred_fallthru
    _
  // Predicated region
  $region14: #{scadacos_forward.4} parent=0 // pred_check
    _
  $region15: #{scadacos_forward.4} parent=0 // pred_check_branch
    %31 = sbr.rel (0) target = $region17
  $region16: #{scadacos_forward.4} parent=0 // pred_region
    _
  $region17: #{scadacos_forward.4} parent=0 // pred_fallthru
    _
  // Predicated region
  $region18: #{scadacos_forward.4} parent=0 // pred_check
    _
  $region19: #{scadacos_forward.4} parent=0 // pred_check_branch
    %33 = sbr.rel (0) target = $region21
  $region20: #{scadacos_forward.4} parent=0 // pred_region
    _
  $region21: #{scadacos_forward.4} parent=0 // pred_fallthru
    _
  // Predicated region
  $region22: #{scadacos_forward.4} parent=0 // pred_check
    _
  $region23: #{scadacos_forward.4} parent=0 // pred_check_branch
    %35 = sbr.rel (0) target = $region25
  $region24: #{scadacos_forward.4} parent=0 // pred_region
    _
  $region25: #{scadacos_forward.4} parent=0 // pred_fallthru
    _

// kernel: scadacos_forward.3
$region0: #{scadacos_forward.3}
  #allocation0 [shape = 'u32[]', space=smem, size = 0x4, offset = 0x4, fixed_abs, tag = 'smem constant byte address 0x4 - core index']
  #allocation1 [shape = 'u32[144,128]{1,0:T(1,128)}', space=vmem, size = 0x12000, scoped, tag = 'internal scratch']
  #allocation2 [shape = 'f32[8,128]{1,0:T(8,128)}', space=vmem, size = 0x1000, scoped, tag = 'scratch operand']
  %s0 = inlined_call_operand.vmem [shape: f32[8,1], index: 0, kind: input, shape index: {}]
  %s1 = inlined_call_operand.vmem [shape: f32[1,128], index: 1, kind: input, shape index: {}]
  %s2 = inlined_call_operand.vmem [shape: bf16[8,64], index: 2, kind: input, shape index: {}]
  %s3 = inlined_call_operand.vmem [shape: bf16[64,128], index: 3, kind: input, shape index: {}]
  %s4 = inlined_call_operand.vmem [shape: f32[8,128], index: 4, kind: output, shape index: {}]
  %s5 = sld [smem:[#allocation0]]
  $region34: #{scadacos_forward.3} parent=0
    _
  %s7 = ssub.s32 1, %s5
  %s8 = scalar_select 0, %s7, %s5
  // Predicated region
  $region2: #{scadacos_forward.3} parent=0 // pred_check
    _
  $region3: #{scadacos_forward.3} parent=0 // pred_check_branch
    %10 = sbr.rel (0) target = $region5
  $region4: #{scadacos_forward.3} parent=0 // pred_region
    _
  $region5: #{scadacos_forward.3} parent=0 // pred_fallthru
    _
  // Predicated region
  $region6: #{scadacos_forward.3} parent=0 // pred_check
    _
  $region7: #{scadacos_forward.3} parent=0 // pred_check_branch
    %12 = sbr.rel (0) target = $region9
  $region8: #{scadacos_forward.3} parent=0 // pred_region
    _
  $region9: #{scadacos_forward.3} parent=0 // pred_fallthru
    _
  // Predicated region
  $region10: #{scadacos_forward.3} parent=0 // pred_check
    _
  $region11: #{scadacos_forward.3} parent=0 // pred_check_branch
    %14 = sbr.rel (0) target = $region13
  $region12: #{scadacos_forward.3} parent=0 // pred_region
    _
  $region13: #{scadacos_forward.3} parent=0 // pred_fallthru
    _
  // Predicated region
  $region14: #{scadacos_forward.3} parent=0 // pred_check
    _
  $region15: #{scadacos_forward.3} parent=0 // pred_check_branch
    %16 = sbr.rel (0) target = $region17
  $region16: #{scadacos_forward.3} parent=0 // pred_region
    _
  $region17: #{scadacos_forward.3} parent=0 // pred_fallthru
    _
  %p18 = scmp.eq.s32.totalorder 0, 0
  // Predicated region
  $region18: #{scadacos_forward.3} parent=0 // pred_check
    %p19 = pneg %p18
  $region19: #{scadacos_forward.3} parent=0 // pred_check_branch
    %21 = sbr.rel (%p19) target = $region21
  $region20: #{scadacos_forward.3} parent=0 // pred_region
    %22 = vst [vmem:[#allocation2] sm:$0xff] 0.0
  $region21: #{scadacos_forward.3} parent=0 // pred_fallthru
    _
  %v23 = vld [vmem:[#allocation2] sm:$0xff]
  %v24 = vld [vmem:[%s2] sm:$0xf]
  %v25 = vld [vmem:[%s3] sm:$0xf]
  %v26 = vld [vmem:[%s3 + $0x4] sm:$0xf]
  %v27 = vld [vmem:[%s3 + $0x8] sm:$0xf]
  %v28 = vld [vmem:[%s3 + $0xc] sm:$0xf]
  %v29 = vld [vmem:[%s3 + $0x10] sm:$0xf]
  %v30 = vld [vmem:[%s3 + $0x14] sm:$0xf]
  %v31 = vld [vmem:[%s3 + $0x18] sm:$0xf]
  %v32 = vld [vmem:[%s3 + $0x1c] sm:$0xf]
  %v41 = vunpack.c.l.b16 %v25
  %v42 = vunpack.c.l.b16 %v26
  %v43 = vunpack.c.l.b16 %v27
  %v44 = vunpack.c.l.b16 %v28
  %v45 = vunpack.c.l.b16 %v29
  %v46 = vunpack.c.l.b16 %v30
  %v47 = vunpack.c.l.b16 %v31
  %v48 = vunpack.c.l.b16 %v32
  %v49 = vpack.c.b16 %v42, %v41
  %v50 = vpack.c.b16 %v44, %v43
  %v51 = vpack.c.b16 %v46, %v45
  %v52 = vpack.c.b16 %v48, %v47
  %vm57 = vcmask 523264
  %v59 = vsel %vm57, %v24, 0
  %61 = vmatprep.subr.bf16.mxu0 0
  %62 = vmatpush1.bf16.msra.mxu0 %v49
  %63 = vmatprep.subr.bf16.mxu0 0
  %64 = vmatpush1.bf16.msra.mxu0 %v50
  %65 = vmatprep.subr.bf16.mxu0 0
  %66 = vmatpush1.bf16.msra.mxu0 %v51
  %67 = vmatprep.subr.bf16.mxu0 0
  %68 = vmatpush1.bf16.msra.mxu0 %v52
  %69 = vmatprep.subr.bf16.mxu0 0
  %70 = vmatpush1.bf16.msra.mxu0 0
  %71 = vmatprep.subr.bf16.mxu0 0
  %72 = vmatpush1.bf16.msra.mxu0 0
  %73 = vmatprep.subr.bf16.mxu0 0
  %74 = vmatpush1.bf16.msra.mxu0 0
  %75 = vmatprep.subr.bf16.mxu0 0
  %76 = vmatpush1.bf16.msra.mxu0 0
  %77 = vmatprep.subr.bf16.mxu0 0
  %78 = vmatpush1.bf16.msra.mxu0 0
  %79 = vmatprep.subr.bf16.mxu0 0
  %80 = vmatpush1.bf16.msra.mxu0 0
  %81 = vmatprep.subr.bf16.mxu0 0
  %82 = vmatpush1.bf16.msra.mxu0 0
  %83 = vmatprep.subr.bf16.mxu0 0
  %84 = vmatpush1.bf16.msra.mxu0 0
  %85 = vmatprep.subr.bf16.mxu0 0
  %86 = vmatpush1.bf16.msra.mxu0 0
  %87 = vmatprep.subr.bf16.mxu0 0
  %88 = vmatpush1.bf16.msra.mxu0 0
  %89 = vmatprep.subr.bf16.mxu0 0
  %90 = vmatpush1.bf16.msra.mxu0 0
  %91 = vmatprep.subr.bf16.mxu0 0
  %92 = vmatpush1.bf16.msra.mxu0 0
  %93 = vmatprep.mubr.bf16.mxu0 0
  %94 = vmatmul.mubr.bf16.gmra.mrb[0].mxu0 %v59
  %v95 = vpop.f32.mrb[0].mxu0
  %v96 = vadd.f32 0.0, %v95
  %v97 = vpop.f32.mrb[0].mxu0
  %v98 = vpop.f32.mrb[0].mxu0
  %v99 = vpop.f32.mrb[0].mxu0
  %100 = vdwg.mxu0
  %v101 = vadd.f32 %v23, %v96
  %102 = vst [vmem:[#allocation2] sm:$0xff] %v101
  // Predicated region
  $region22: #{scadacos_forward.3} parent=0 // pred_check
    %p103 = pneg %p18
  $region23: #{scadacos_forward.3} parent=0 // pred_check_branch
    %105 = sbr.rel (%p103) target = $region25
  $region24: #{scadacos_forward.3} parent=0 // pred_region
    %v106 = vld [vmem:[#allocation2] sm:$0xff]
    %v107 = vld [vmem:[%s0] sm:$0xff]
    %109 = vset.pattern.permute.xlu0 0
    %110 = vperm.xlu0 %109, %v107
    %v111 = vpop.permute.xlu0 %110
    %v113 = vmul.f32 %v106, %v111
    %v114 = vld [vmem:[%s1] sm:$0x1]
    %v116 = vlaneseq
    %v117 = vshrl.u32 %v116, 7
    %v118 = vsub.s32 0, %v117
    %v119 = vrot.slane %v114, %v118
    %v121 = vmul.f32 %v113, %v119
    %122 = vst [vmem:[%s4] sm:$0xff] %v121
  $region25: #{scadacos_forward.3} parent=0 // pred_fallthru
    _
  // Predicated region
  $region26: #{scadacos_forward.3} parent=0 // pred_check
    _
  $region27: #{scadacos_forward.3} parent=0 // pred_check_branch
    %124 = sbr.rel (0) target = $region29
  $region28: #{scadacos_forward.3} parent=0 // pred_region
    _
  $region29: #{scadacos_forward.3} parent=0 // pred_fallthru
    _
  // Predicated region
  $region30: #{scadacos_forward.3} parent=0 // pred_check
    _
  $region31: #{scadacos_forward.3} parent=0 // pred_check_branch
    %126 = sbr.rel (0) target = $region33
  $region32: #{scadacos_forward.3} parent=0 // pred_region
    _
  $region33: #{scadacos_forward.3} parent=0 // pred_fallthru
    _

// kernel: scadacos_forward.5
$region0: #{scadacos_forward.5}
  #allocation0 [shape = 'u32[]', space=smem, size = 0x4, offset = 0x4, fixed_abs, tag = 'smem constant byte address 0x4 - core index']
  #allocation1 [shape = 'u32[144,128]{1,0:T(1,128)}', space=vmem, size = 0x12000, scoped, tag = 'internal scratch']
  #allocation2 [shape = 'f32[1,1]{1,0:T(1,128)S(6)}', space=smem, size = 0x200, scoped, tag = 'scoped memory for scadacos_forward.5']
  %s0 = inlined_call_operand.<no memory space> [shape: f32[1,1], index: 0, kind: input, shape index: {}]
  %s1 = inlined_call_operand.vmem [shape: f32[8,128], index: 1, kind: input, shape index: {}]
  %s2 = inlined_call_operand.vmem [shape: f32[8,16], index: 2, kind: input, shape index: {}]
  %s3 = inlined_call_operand.vmem [shape: f32[8,1], index: 3, kind: output, shape index: {}]
  %s4 = sld [smem:[#allocation0]]
  $region22: #{scadacos_forward.5} parent=0
    _
  %s6 = ssub.s32 1, %s4
  %s7 = scalar_select 0, %s6, %s4
  %8 = sst [smem:[#allocation2]] %s0
  // Predicated region
  $region2: #{scadacos_forward.5} parent=0 // pred_check
    _
  $region3: #{scadacos_forward.5} parent=0 // pred_check_branch
    %10 = sbr.rel (0) target = $region5
  $region4: #{scadacos_forward.5} parent=0 // pred_region
    _
  $region5: #{scadacos_forward.5} parent=0 // pred_fallthru
    _
  // Predicated region
  $region6: #{scadacos_forward.5} parent=0 // pred_check
    _
  $region7: #{scadacos_forward.5} parent=0 // pred_check_branch
    %12 = sbr.rel (0) target = $region9
  $region8: #{scadacos_forward.5} parent=0 // pred_region
    _
  $region9: #{scadacos_forward.5} parent=0 // pred_fallthru
    _
  // Predicated region
  $region10: #{scadacos_forward.5} parent=0 // pred_check
    _
  $region11: #{scadacos_forward.5} parent=0 // pred_check_branch
    %14 = sbr.rel (0) target = $region13
  $region12: #{scadacos_forward.5} parent=0 // pred_region
    _
  $region13: #{scadacos_forward.5} parent=0 // pred_fallthru
    _
  %s15 = sld [smem:[#allocation2]]
  %v16 = vld [vmem:[%s1] sm:$0xff]
  %v17 = vstv %s15
  %v18 = vmul.f32 %v16, %v17
  %19 = vmax.xlane.f32.xlu0 %v18
  %v20 = vpop.xlane.xlu0 %19
  %v21 = vsub.f32 %v18, %v20
  %v22 = vmul.f32 %v21, 1.442695
  %v23 = vpow.pop %v22
  %24 = vadd.xlane.f32.xlu0 %v23
  %v25 = vpop.xlane.xlu0 %24
  %v26 = vrcp.pop %v25
  %v27 = vmul.f32 %v23, %v26
  %v28 = vlaneseq
  %v29 = vshrl.u32 %v28, 7
  %v30 = vadd.s32 %v29, 8
  %v31 = vadd.s32 %v29, 16
  %v32 = vadd.s32 %v29, 24
  %v33 = vadd.s32 %v29, 32
  %v34 = vadd.s32 %v29, 40
  %v35 = vadd.s32 %v29, 48
  %v36 = vadd.s32 %v29, 56
  %v37 = vadd.s32 %v29, 64
  %v38 = vadd.s32 %v29, 72
  %v39 = vadd.s32 %v29, 80
  %v40 = vadd.s32 %v29, 88
  %v41 = vadd.s32 %v29, 96
  %v42 = vadd.s32 %v29, 104
  %v43 = vadd.s32 %v29, 112
  %v44 = vadd.s32 %v29, 120
  %v45 = vlaneseq
  %v46 = vand.u32 %v45, 127
  %v47 = vmul.u32 %v46, 8
  %vm48 = vcmp.ge.s32.totalorder %v29, %v47
  %vm49 = vcmp.ge.s32.totalorder %v30, %v47
  %vm50 = vcmp.ge.s32.totalorder %v31, %v47
  %vm51 = vcmp.ge.s32.totalorder %v32, %v47
  %vm52 = vcmp.ge.s32.totalorder %v33, %v47
  %vm53 = vcmp.ge.s32.totalorder %v34, %v47
  %vm54 = vcmp.ge.s32.totalorder %v35, %v47
  %vm55 = vcmp.ge.s32.totalorder %v36, %v47
  %vm56 = vcmp.ge.s32.totalorder %v37, %v47
  %vm57 = vcmp.ge.s32.totalorder %v38, %v47
  %vm58 = vcmp.ge.s32.totalorder %v39, %v47
  %vm59 = vcmp.ge.s32.totalorder %v40, %v47
  %vm60 = vcmp.ge.s32.totalorder %v41, %v47
  %vm61 = vcmp.ge.s32.totalorder %v42, %v47
  %vm62 = vcmp.ge.s32.totalorder %v43, %v47
  %vm63 = vcmp.ge.s32.totalorder %v44, %v47
  %v64 = vadd.s32 %v47, 8
  %vm65 = vcmp.lt.s32.totalorder %v29, %v64
  %vm66 = vcmp.lt.s32.totalorder %v30, %v64
  %vm67 = vcmp.lt.s32.totalorder %v31, %v64
  %vm68 = vcmp.lt.s32.totalorder %v32, %v64
  %vm69 = vcmp.lt.s32.totalorder %v33, %v64
  %vm70 = vcmp.lt.s32.totalorder %v34, %v64
  %vm71 = vcmp.lt.s32.totalorder %v35, %v64
  %vm72 = vcmp.lt.s32.totalorder %v36, %v64
  %vm73 = vcmp.lt.s32.totalorder %v37, %v64
  %vm74 = vcmp.lt.s32.totalorder %v38, %v64
  %vm75 = vcmp.lt.s32.totalorder %v39, %v64
  %vm76 = vcmp.lt.s32.totalorder %v40, %v64
  %vm77 = vcmp.lt.s32.totalorder %v41, %v64
  %vm78 = vcmp.lt.s32.totalorder %v42, %v64
  %vm79 = vcmp.lt.s32.totalorder %v43, %v64
  %vm80 = vcmp.lt.s32.totalorder %v44, %v64
  %vm81 = vmand %vm48, %vm65
  %vm82 = vmand %vm49, %vm66
  %vm83 = vmand %vm50, %vm67
  %vm84 = vmand %vm51, %vm68
  %vm85 = vmand %vm52, %vm69
  %vm86 = vmand %vm53, %vm70
  %vm87 = vmand %vm54, %vm71
  %vm88 = vmand %vm55, %vm72
  %vm89 = vmand %vm56, %vm73
  %vm90 = vmand %vm57, %vm74
  %vm91 = vmand %vm58, %vm75
  %vm92 = vmand %vm59, %vm76
  %vm93 = vmand %vm60, %vm77
  %vm94 = vmand %vm61, %vm78
  %vm95 = vmand %vm62, %vm79
  %vm96 = vmand %vm63, %vm80
  %v97 = vsel %vm81, 1, 0
  %v98 = vsel %vm82, 1, 0
  %v99 = vsel %vm83, 1, 0
  %v100 = vsel %vm84, 1, 0
  %v101 = vsel %vm85, 1, 0
  %v102 = vsel %vm86, 1, 0
  %v103 = vsel %vm87, 1, 0
  %v104 = vsel %vm88, 1, 0
  %v105 = vsel %vm89, 1, 0
  %v106 = vsel %vm90, 1, 0
  %v107 = vsel %vm91, 1, 0
  %v108 = vsel %vm92, 1, 0
  %v109 = vsel %vm93, 1, 0
  %v110 = vsel %vm94, 1, 0
  %v111 = vsel %vm95, 1, 0
  %v112 = vsel %vm96, 1, 0
  %v113 = vcvt.s32.f32 %v97
  %v114 = vcvt.s32.f32 %v98
  %v115 = vcvt.s32.f32 %v99
  %v116 = vcvt.s32.f32 %v100
  %v117 = vcvt.s32.f32 %v101
  %v118 = vcvt.s32.f32 %v102
  %v119 = vcvt.s32.f32 %v103
  %v120 = vcvt.s32.f32 %v104
  %v121 = vcvt.s32.f32 %v105
  %v122 = vcvt.s32.f32 %v106
  %v123 = vcvt.s32.f32 %v107
  %v124 = vcvt.s32.f32 %v108
  %v125 = vcvt.s32.f32 %v109
  %v126 = vcvt.s32.f32 %v110
  %v127 = vcvt.s32.f32 %v111
  %v128 = vcvt.s32.f32 %v112
  %129 = vmatprep.subr.mxu0 0.0
  %130 = vmatpush1.msra.mxu0 %v113
  %131 = vmatprep.subr.mxu0 0.0
  %132 = vmatpush1.msra.mxu0 %v114
  %133 = vmatprep.subr.mxu0 0.0
  %134 = vmatpush1.msra.mxu0 %v115
  %135 = vmatprep.subr.mxu0 0.0
  %136 = vmatpush1.msra.mxu0 %v116
  %137 = vmatprep.subr.mxu0 0.0
  %138 = vmatpush1.msra.mxu0 %v117
  %139 = vmatprep.subr.mxu0 0.0
  %140 = vmatpush1.msra.mxu0 %v118
  %141 = vmatprep.subr.mxu0 0.0
  %142 = vmatpush1.msra.mxu0 %v119
  %143 = vmatprep.subr.mxu0 0.0
  %144 = vmatpush1.msra.mxu0 %v120
  %145 = vmatprep.subr.mxu0 0.0
  %146 = vmatpush1.msra.mxu0 %v121
  %147 = vmatprep.subr.mxu0 0.0
  %148 = vmatpush1.msra.mxu0 %v122
  %149 = vmatprep.subr.mxu0 0.0
  %150 = vmatpush1.msra.mxu0 %v123
  %151 = vmatprep.subr.mxu0 0.0
  %152 = vmatpush1.msra.mxu0 %v124
  %153 = vmatprep.subr.mxu0 0.0
  %154 = vmatpush1.msra.mxu0 %v125
  %155 = vmatprep.subr.mxu0 0.0
  %156 = vmatpush1.msra.mxu0 %v126
  %157 = vmatprep.subr.mxu0 0.0
  %158 = vmatpush1.msra.mxu0 %v127
  %159 = vmatprep.subr.mxu0 0.0
  %160 = vmatpush1.msra.mxu0 %v128
  %161 = vmatprep.subr.mxu0 0.0
  %162 = vmatpush1.msra.mxu0 0.0
  %163 = vmatprep.subr.mxu0 0.0
  %164 = vmatpush1.msra.mxu0 0.0
  %165 = vmatprep.subr.mxu0 0.0
  %166 = vmatpush1.msra.mxu0 0.0
  %167 = vmatprep.subr.mxu0 0.0
  %168 = vmatpush1.msra.mxu0 0.0
  %169 = vmatprep.subr.mxu0 0.0
  %170 = vmatpush1.msra.mxu0 0.0
  %171 = vmatprep.subr.mxu0 0.0
  %172 = vmatpush1.msra.mxu0 0.0
  %173 = vmatprep.subr.mxu0 0.0
  %174 = vmatpush1.msra.mxu0 0.0
  %175 = vmatprep.subr.mxu0 0.0
  %176 = vmatpush1.msra.mxu0 0.0
  %177 = vmatprep.subr.mxu0 0.0
  %178 = vmatpush1.msra.mxu0 0.0
  %179 = vmatprep.subr.mxu0 0.0
  %180 = vmatpush1.msra.mxu0 0.0
  %181 = vmatprep.subr.mxu0 0.0
  %182 = vmatpush1.msra.mxu0 0.0
  %183 = vmatprep.subr.mxu0 0.0
  %184 = vmatpush1.msra.mxu0 0.0
  %185 = vmatprep.subr.mxu0 0.0
  %186 = vmatpush1.msra.mxu0 0.0
  %187 = vmatprep.subr.mxu0 0.0
  %188 = vmatpush1.msra.mxu0 0.0
  %189 = vmatprep.subr.mxu0 0.0
  %190 = vmatpush1.msra.mxu0 0.0
  %191 = vmatprep.subr.mxu0 0.0
  %192 = vmatpush1.msra.mxu0 0.0
  %193 = vmatprep.mubr.f32.mxu0 0.0
  %194 = vmatmul.mubr.f32.gmra.mrb[0].mxu0 %v27
  %v195 = vpop.f32.mrb[0].mxu0
  %v196 = vadd.f32 0.0, %v195
  %v197 = vpop.f32.mrb[0].mxu0
  %198 = vdwg.mxu0
  %v199 = vlog2.pop %v196
  %v200 = vmul.f32 %v199, 0.6931472
  %vm201 = vcmask 130048
  %v202 = vsel %vm201, %v196, 0.0
  %203 = vadd.xlane.f32.xlu0 %v202
  %v204 = vpop.xlane.xlu0 %203
  %v205 = vlog2.pop %v204
  %v206 = vmul.f32 %v205, 0.6931472
  %v207 = vsub.f32 %v200, %v206
  %v208 = vld [vmem:[%s2] sm:$0xff]
  %v209 = vmul.f32 %v208, %v207
  %v210 = vsel %vm201, %v209, 0.0
  %211 = vadd.xlane.f32.xlu0 %v210
  %v212 = vpop.xlane.xlu0 %211
  %v213 = vsub.f32 0.0, %v212
  %vm214 = vcmask 7168
  %215 = vst.msk [vmem:[%s3] sm:$0xff] %vm214, %v213
  // Predicated region
  $region14: #{scadacos_forward.5} parent=0 // pred_check
    _
  $region15: #{scadacos_forward.5} parent=0 // pred_check_branch
    %217 = sbr.rel (0) target = $region17
  $region16: #{scadacos_forward.5} parent=0 // pred_region
    _
  $region17: #{scadacos_forward.5} parent=0 // pred_fallthru
    _
  // Predicated region
  $region18: #{scadacos_forward.5} parent=0 // pred_check
    _
  $region19: #{scadacos_forward.5} parent=0 // pred_check_branch
    %219 = sbr.rel (0) target = $region21
  $region20: #{scadacos_forward.5} parent=0 // pred_region
    _
  $region21: #{scadacos_forward.5} parent=0 // pred_fallthru
    _

</llo_original>
